<compile_context>
chip_gen: v5e
topology: v5e:2x2
jax: 0.10.0
libtpu: 0.0.40
codegen_flags: <defaults>
</compile_context>

<pallas_src>
import functools

import jax
import jax.numpy as jnp
from jax.experimental import pallas as pl
from jax.experimental.pallas import tpu as pltpu


def _round_up(x, m):
    return ((x + m - 1) // m) * m


def lgm_loss_kernel(x_ref, feat_ref, label_ref, w_ref, ch_ref, rows_ref,
                    logits_ref, mlogits_ref, lik_ref,
                    *, alpha, batch_size, feat_dim):
    i = pl.program_id(0)
    b_tile, c_pad = logits_ref.shape
    d = feat_dim

    contract_last = (((1,), (1,)), ((), ()))          # A @ B^T, no XLU transpose

    rows = rows_ref[...]                              # [2, c_pad] f32
    bias = rows[0:1, :]                               # -0.5*(slog + sum(mu^2/cov))
    half_slog = rows[1:2, :]                          # 0.5*slog

    # Fused Mahalanobis matmul: X=[f^2|f] (Bt,2D) x W=[-0.5/cov|mu/cov] (C,2D)^T
    logits = jax.lax.dot_general(
        x_ref[...], w_ref[...], contract_last,
        preferred_element_type=jnp.float32) + bias    # [Bt, c_pad] f32

    # One-hot labels + validity mask for padded batch rows.
    labels = label_ref[...]                           # [Bt, 1] int32
    cls_ids = jax.lax.broadcasted_iota(jnp.int32, (b_tile, c_pad), 1)
    row_ids = jax.lax.broadcasted_iota(jnp.int32, (b_tile, 1), 0) + i * b_tile
    valid = row_ids < batch_size                      # [Bt, 1] bool
    onehot = jnp.logical_and(labels == cls_ids, valid).astype(jnp.float32)

    logits_ref[...] = logits.astype(logits_ref.dtype)
    # margin_logits = -0.5*(slog + dist*(1+alpha*onehot))
    #               = logits + alpha*onehot*(logits + 0.5*slog)
    mlogits_ref[...] = (logits + alpha * (onehot * (logits + half_slog))
                        ).astype(mlogits_ref.dtype)

    # Likelihood per-row partials.  Exact one-hot gather of centers via a bf16
    # hi/lo-split matmul (selection is exact; hi+lo recovers f32 centers).
    sel = jnp.dot(onehot.astype(jnp.bfloat16), ch_ref[...],
                  preferred_element_type=jnp.float32)            # [Bt, 2D]
    centers_sel = sel[:, :d] + sel[:, d:]                        # [Bt, D] f32
    cdiff = jnp.where(valid, feat_ref[...] - centers_sel, 0.0)   # masked rows
    cdist_row = 0.5 * jnp.sum(cdiff * cdiff, axis=-1, keepdims=True)
    reg_row = jnp.sum(onehot * half_slog, axis=-1, keepdims=True)
    lik_ref[...] = cdist_row + reg_row                           # [Bt, 1] f32


def _vmem_estimate(b_tile, c_pad, d, cbytes, obytes):
    """Rough per-step double-buffered VMEM footprint (bytes)."""
    two_d = 2 * d
    est = 0
    est += 2 * b_tile * two_d * cbytes        # X tiles
    est += 2 * b_tile * d * 4                 # feat tiles (f32)
    est += 2 * b_tile * 128 * 4               # label column (lane-padded)
    est += 2 * c_pad * two_d * cbytes         # W (resident, still double-buffered)
    est += 2 * c_pad * two_d * 2              # centers hi/lo (bf16)
    est += 2 * 8 * c_pad * 4                  # const rows (sublane-padded)
    est += 2 * 2 * b_tile * c_pad * obytes    # logits + margin_logits outputs
    est += 2 * b_tile * 128 * 4               # likelihood rows (lane-padded)
    est += 4 * b_tile * c_pad * 4             # in-body f32 temporaries
    return est


def lgm_loss(feat, label, centers, log_covs, alpha, *,
             block_b=256, compute_dtype=jnp.bfloat16, out_dtype=jnp.float32):
    B, D = feat.shape
    C, D2 = centers.shape
    assert D == D2

    c_pad = _round_up(max(C, 128), 128)               # lane-dense class dim
    row_mult = 16 if compute_dtype == jnp.bfloat16 else 8
    cbytes = jnp.dtype(compute_dtype).itemsize
    obytes = jnp.dtype(out_dtype).itemsize

    b_tile = max(row_mult, _round_up(min(block_b, B), row_mult))
    while (b_tile > row_mult
           and _vmem_estimate(b_tile, c_pad, D, cbytes, obytes) > (24 << 20)):
        b_tile = max(row_mult, _round_up(b_tile // 2, row_mult))
    b_pad = _round_up(B, b_tile)
    n_tiles = b_pad // b_tile
    vmem_limit = int(min(64 << 20,
                         max(32 << 20,
                             2 * _vmem_estimate(b_tile, c_pad, D, cbytes, obytes))))

    # ---- hoisted per-class precompute (tiny XLA work, once per call) ----
    feat32 = feat.astype(jnp.float32)
    centers32 = centers.astype(jnp.float32)
    logc32 = log_covs.astype(jnp.float32)
    inv_cov = jnp.exp(-logc32)                                   # [C, D]
    w = jnp.concatenate([-0.5 * inv_cov, centers32 * inv_cov], axis=-1)  # [C, 2D]
    slog = jnp.sum(logc32, axis=-1)                              # [C]
    t3 = jnp.sum(centers32 * centers32 * inv_cov, axis=-1)       # [C]
    bias = -0.5 * (slog + t3)
    half_slog = 0.5 * slog
    c_hi = centers32.astype(jnp.bfloat16)
    c_lo = (centers32 - c_hi.astype(jnp.float32)).astype(jnp.bfloat16)
    ch = jnp.concatenate([c_hi, c_lo], axis=-1)                  # [C, 2D] bf16

    w_p = jnp.pad(w, ((0, c_pad - C), (0, 0))).astype(compute_dtype)
    ch_p = jnp.pad(ch, ((0, c_pad - C), (0, 0)))
    rows_p = jnp.pad(jnp.stack([bias, half_slog], axis=0),
                     ((0, 0), (0, c_pad - C)))                   # [2, c_pad] f32

    x = jnp.concatenate([feat32 * feat32, feat32], axis=-1)      # square in f32
    x_p = jnp.pad(x, ((0, b_pad - B), (0, 0))).astype(compute_dtype)
    feat_p = jnp.pad(feat32, ((0, b_pad - B), (0, 0)))
    label_p = jnp.pad(label.astype(jnp.int32), (0, b_pad - B)).reshape(b_pad, 1)

    kernel = functools.partial(lgm_loss_kernel, alpha=float(alpha),
                               batch_size=B, feat_dim=D)

    logits, mlogits, lik_rows = pl.pallas_call(
        kernel,
        out_shape=(
            jax.ShapeDtypeStruct((b_pad, c_pad), out_dtype),
            jax.ShapeDtypeStruct((b_pad, c_pad), out_dtype),
            jax.ShapeDtypeStruct((b_pad, 1), jnp.float32),
        ),
        grid=(n_tiles,),
        in_specs=[
            pl.BlockSpec((b_tile, 2 * D), lambda i: (i, 0)),     # X = [f^2|f]
            pl.BlockSpec((b_tile, D), lambda i: (i, 0)),         # feat (f32)
            pl.BlockSpec((b_tile, 1), lambda i: (i, 0)),         # label column
            pl.BlockSpec((c_pad, 2 * D), lambda i: (0, 0)),      # W (resident)
            pl.BlockSpec((c_pad, 2 * D), lambda i: (0, 0)),      # centers hi/lo
            pl.BlockSpec((2, c_pad), lambda i: (0, 0)),          # bias / 0.5*slog
        ],
        out_specs=(
            pl.BlockSpec((b_tile, c_pad), lambda i: (i, 0)),     # logits
            pl.BlockSpec((b_tile, c_pad), lambda i: (i, 0)),     # margin_logits
            pl.BlockSpec((b_tile, 1), lambda i: (i, 0)),         # likelihood rows
        ),
        compiler_params=pltpu.CompilerParams(
            dimension_semantics=("parallel",),
            vmem_limit_bytes=vmem_limit),
    )(x_p, feat_p, label_p, w_p, ch_p, rows_p)

    likelihood = jnp.sum(lik_rows) * jnp.float32(1.0 / B)
    return logits[:B, :C], mlogits[:B, :C], likelihood


def lgm_loss_ref(feat, label, centers, log_covs, alpha):
    """Pure-JAX reference mirroring the PyTorch forward."""
    B = feat.shape[0]
    C = centers.shape[0]
    covs = jnp.exp(log_covs)[None]                       # [1, C, D]
    diff = feat[:, None, :] - centers[None, :, :]        # [B, C, D]
    dist = jnp.sum(diff * diff / covs, axis=-1)          # [B, C]
    y_onehot = jax.nn.one_hot(label, C, dtype=jnp.float32) * alpha + 1.0
    margin_dist = dist * y_onehot
    slog = jnp.sum(log_covs, axis=-1)                    # [C]
    margin_logits = -0.5 * (slog[None, :] + margin_dist)
    logits = -0.5 * (slog[None, :] + dist)
    cdiff = feat - centers[label]
    cdist = jnp.sum(cdiff ** 2) / 2.0
    reg = 0.5 * jnp.sum(slog[label])
    likelihood = (cdist + reg) / B
    return logits, margin_logits, likelihood


if __name__ == "__main__":
    num_classes = 10
    feat_dim = 32
    batch = 20
    alpha = 0.1

    key = jax.random.PRNGKey(0)
    k_feat, k_centers, k_label, k_logc = jax.random.split(key, 4)

    # Module parameters (centers ~ randn; log_covs is a learnable parameter —
    # use small random values so the covariance path is actually exercised).
    centers = jax.random.normal(k_centers, (num_classes, feat_dim), jnp.float32)
    log_covs = 0.2 * jax.random.normal(k_logc, (num_classes, feat_dim), jnp.float32)

    feat = jax.random.normal(k_feat, (batch, feat_dim), jnp.float32)
    label = jax.random.randint(k_label, (batch,), 0, num_classes, jnp.int32)

    ref_logits, ref_mlogits, ref_lik = lgm_loss_ref(feat, label, centers,
                                                    log_covs, alpha)

    # Run 1: f32 matmul operands, 3 batch tiles (exercises padding/masking).
    lg32, ml32, lk32 = lgm_loss(feat, label, centers, log_covs, alpha,
                                block_b=8, compute_dtype=jnp.float32)
    jax.block_until_ready((lg32, ml32, lk32))
    assert jnp.allclose(lg32, ref_logits, rtol=1e-3, atol=1e-3)
    assert jnp.allclose(ml32, ref_mlogits, rtol=1e-3, atol=1e-3)
    assert jnp.allclose(lk32, ref_lik, rtol=5e-4, atol=1e-4)

    # Run 2: default bf16 MXU operands, 2 batch tiles.  Likelihood path stays
    # ~f32-accurate thanks to the hi/lo centers split.
    logits, margin_logits, likelihood = lgm_loss(
        feat, label, centers, log_covs, alpha, block_b=16)
    jax.block_until_ready((logits, margin_logits, likelihood))
    assert jnp.allclose(logits, ref_logits, rtol=2e-2, atol=2e-1)
    assert jnp.allclose(margin_logits, ref_mlogits, rtol=2e-2, atol=2e-1)
    assert jnp.allclose(likelihood, ref_lik, rtol=5e-4, atol=1e-4)

    print("KERNEL_OK")
</pallas_src>

<mosaic_0001>
module attributes {stable_mosaic.version = 11 : i64} {
  func.func @lgm_loss_kernel(%arg0: i32, %arg1: memref<8x64xf32, #tpu.memory_space<vmem>>, %arg2: memref<8x32xf32, #tpu.memory_space<vmem>>, %arg3: memref<8x1xi32, #tpu.memory_space<vmem>>, %arg4: memref<128x64xf32, #tpu.memory_space<vmem>>, %arg5: memref<128x64xbf16, #tpu.memory_space<vmem>>, %arg6: memref<2x128xf32, #tpu.memory_space<vmem>>, %arg7: memref<8x128xf32, #tpu.memory_space<vmem>>, %arg8: memref<8x128xf32, #tpu.memory_space<vmem>>, %arg9: memref<8x1xf32, #tpu.memory_space<vmem>>) attributes {dimension_semantics = [#tpu.dimension_semantics<parallel>], iteration_bounds = array<i64: 3>, scalar_prefetch = 0 : i64, scratch_operands = 0 : i64, tpu.core_type = #tpu.core_type<tc>, window_params = [{transform_indices = @transform_0, window_bounds = array<i64: 8, 64>}, {transform_indices = @transform_1, window_bounds = array<i64: 8, 32>}, {transform_indices = @transform_2, window_bounds = array<i64: 8, 1>}, {pipeline_mode = #tpu.pipeline_mode<synchronous>, transform_indices = @transform_3, window_bounds = array<i64: 128, 64>}, {pipeline_mode = #tpu.pipeline_mode<synchronous>, transform_indices = @transform_4, window_bounds = array<i64: 128, 64>}, {pipeline_mode = #tpu.pipeline_mode<synchronous>, transform_indices = @transform_5, window_bounds = array<i64: 2, 128>}, {transform_indices = @transform_6, window_bounds = array<i64: 8, 128>}, {transform_indices = @transform_7, window_bounds = array<i64: 8, 128>}, {transform_indices = @transform_8, window_bounds = array<i64: 8, 1>}]} {
    %c0 = arith.constant 0 : index
    %c0_0 = arith.constant 0 : index
    %0 = vector.load %arg6[%c0, %c0_0] : memref<2x128xf32, #tpu.memory_space<vmem>>, vector<2x128xf32>
    %1 = vector.extract_strided_slice %0 {offsets = [0, 0], sizes = [1, 128], strides = [1, 1]} : vector<2x128xf32> to vector<1x128xf32>
    %2 = vector.extract_strided_slice %0 {offsets = [1, 0], sizes = [1, 128], strides = [1, 1]} : vector<2x128xf32> to vector<1x128xf32>
    %c0_1 = arith.constant 0 : index
    %c0_2 = arith.constant 0 : index
    %3 = vector.load %arg1[%c0_1, %c0_2] : memref<8x64xf32, #tpu.memory_space<vmem>>, vector<8x64xf32>
    %c0_3 = arith.constant 0 : index
    %c0_4 = arith.constant 0 : index
    %4 = vector.load %arg4[%c0_3, %c0_4] : memref<128x64xf32, #tpu.memory_space<vmem>>, vector<128x64xf32>
    %cst = arith.constant dense<0.000000e+00> : vector<8x128xf32>
    %5 = tpu.matmul %3, %4, %cst {dimension_numbers = #tpu.dot_dimension_numbers<[1], [1], [0], [0], [0, 0, 1, 0], [], []>} : vector<8x64xf32>, vector<128x64xf32>, vector<8x128xf32> -> vector<8x128xf32>
    %6 = vector.broadcast %1 : vector<1x128xf32> to vector<8x128xf32>
    %7 = arith.addf %5, %6 : vector<8x128xf32>
    %c0_5 = arith.constant 0 : index
    %c0_6 = arith.constant 0 : index
    %8 = vector.load %arg3[%c0_5, %c0_6] : memref<8x1xi32, #tpu.memory_space<vmem>>, vector<8x1xi32>
    %9 = tpu.iota {dimensions = array<i32: 1>} : vector<8x128xi32>
    %10 = tpu.iota {dimensions = array<i32: 0>} : vector<8x1xi32>
    %c8_i32 = arith.constant 8 : i32
    %11 = arith.muli %arg0, %c8_i32 : i32
    %12 = vector.broadcast %11 : i32 to vector<8x1xi32>
    %13 = arith.addi %10, %12 : vector<8x1xi32>
    %c20_i32 = arith.constant 20 : i32
    %14 = vector.broadcast %c20_i32 : i32 to vector<8x1xi32>
    %15 = arith.cmpi slt, %13, %14 : vector<8x1xi32>
    %16 = vector.broadcast %8 : vector<8x1xi32> to vector<8x128xi32>
    %17 = arith.cmpi eq, %16, %9 : vector<8x128xi32>
    %18 = vector.broadcast %15 : vector<8x1xi1> to vector<8x128xi1>
    %19 = arith.andi %17, %18 : vector<8x128xi1>
    %20 = arith.extui %19 : vector<8x128xi1> to vector<8x128xi32>
    %21 = arith.sitofp %20 : vector<8x128xi32> to vector<8x128xf32>
    %c0_7 = arith.constant 0 : index
    %c0_8 = arith.constant 0 : index
    %22 = vector.load %arg7[%c0_7, %c0_8] : memref<8x128xf32, #tpu.memory_space<vmem>>, vector<8x128xf32>
    tpu.vector_store %arg7[%c0_7, %c0_8], %7 {strides = array<i32>} : memref<8x128xf32, #tpu.memory_space<vmem>>, vector<8x128xf32>,
    %23 = vector.broadcast %2 : vector<1x128xf32> to vector<8x128xf32>
    %24 = arith.addf %7, %23 : vector<8x128xf32>
    %25 = arith.mulf %21, %24 : vector<8x128xf32>
    %cst_9 = arith.constant 1.000000e-01 : f32
    %26 = vector.broadcast %cst_9 : f32 to vector<8x128xf32>
    %27 = arith.mulf %26, %25 : vector<8x128xf32>
    %28 = arith.addf %7, %27 : vector<8x128xf32>
    %c0_10 = arith.constant 0 : index
    %c0_11 = arith.constant 0 : index
    %29 = vector.load %arg8[%c0_10, %c0_11] : memref<8x128xf32, #tpu.memory_space<vmem>>, vector<8x128xf32>
    tpu.vector_store %arg8[%c0_10, %c0_11], %28 {strides = array<i32>} : memref<8x128xf32, #tpu.memory_space<vmem>>, vector<8x128xf32>,
    %30 = arith.truncf %21 : vector<8x128xf32> to vector<8x128xbf16>
    %c0_12 = arith.constant 0 : index
    %c0_13 = arith.constant 0 : index
    %31 = vector.load %arg5[%c0_12, %c0_13] : memref<128x64xbf16, #tpu.memory_space<vmem>>, vector<128x64xbf16>
    %cst_14 = arith.constant dense<0.000000e+00> : vector<8x64xf32>
    %32 = tpu.matmul %30, %31, %cst_14 {dimension_numbers = #tpu.dot_dimension_numbers<[1], [0], [0], [1], [0, 0, 1, 1], [], []>} : vector<8x128xbf16>, vector<128x64xbf16>, vector<8x64xf32> -> vector<8x64xf32>
    %33 = vector.extract_strided_slice %32 {offsets = [0, 0], sizes = [8, 32], strides = [1, 1]} : vector<8x64xf32> to vector<8x32xf32>
    %34 = vector.extract_strided_slice %32 {offsets = [0, 32], sizes = [8, 32], strides = [1, 1]} : vector<8x64xf32> to vector<8x32xf32>
    %35 = arith.addf %33, %34 : vector<8x32xf32>
    %c0_15 = arith.constant 0 : index
    %c0_16 = arith.constant 0 : index
    %36 = vector.load %arg2[%c0_15, %c0_16] : memref<8x32xf32, #tpu.memory_space<vmem>>, vector<8x32xf32>
    %37 = arith.subf %36, %35 : vector<8x32xf32>
    %cst_17 = arith.constant 0.000000e+00 : f32
    %38 = vector.shape_cast %15 : vector<8x1xi1> to vector<8x1xi1>
    %39 = vector.broadcast %38 : vector<8x1xi1> to vector<8x32xi1>
    %40 = vector.broadcast %cst_17 : f32 to vector<8x32xf32>
    %41 = arith.select %39, %37, %40 : vector<8x32xi1>, vector<8x32xf32>
    %42 = arith.mulf %41, %41 : vector<8x32xf32>
    %cst_18 = arith.constant dense<0.000000e+00> : vector<8xf32>
    %43 = vector.multi_reduction <add>, %42, %cst_18 [1] : vector<8x32xf32> to vector<8xf32>
    %44 = vector.shape_cast %43 : vector<8xf32> to vector<8x1xf32>
    %cst_19 = arith.constant 5.000000e-01 : f32
    %45 = vector.broadcast %cst_19 : f32 to vector<8x1xf32>
    %46 = arith.mulf %45, %44 : vector<8x1xf32>
    %47 = vector.broadcast %2 : vector<1x128xf32> to vector<8x128xf32>
    %48 = arith.mulf %21, %47 : vector<8x128xf32>
    %cst_20 = arith.constant dense<0.000000e+00> : vector<8xf32>
    %49 = vector.multi_reduction <add>, %48, %cst_20 [1] : vector<8x128xf32> to vector<8xf32>
    %50 = vector.shape_cast %49 : vector<8xf32> to vector<8x1xf32>
    %51 = arith.addf %46, %50 : vector<8x1xf32>
    %c0_21 = arith.constant 0 : index
    %c0_22 = arith.constant 0 : index
    %52 = vector.load %arg9[%c0_21, %c0_22] : memref<8x1xf32, #tpu.memory_space<vmem>>, vector<8x1xf32>
    tpu.vector_store %arg9[%c0_21, %c0_22], %51 {strides = array<i32>} : memref<8x1xf32, #tpu.memory_space<vmem>>, vector<8x1xf32>,
    return
  }
  func.func @transform_0(%arg0: i32) -> (i32, i32) {
    %c0_i32 = arith.constant 0 : i32
    %c0_i32_0 = arith.constant 0 : i32
    return %arg0, %c0_i32 : i32, i32
  }
  func.func @transform_1(%arg0: i32) -> (i32, i32) {
    %c0_i32 = arith.constant 0 : i32
    %c0_i32_0 = arith.constant 0 : i32
    return %arg0, %c0_i32 : i32, i32
  }
  func.func @transform_2(%arg0: i32) -> (i32, i32) {
    %c0_i32 = arith.constant 0 : i32
    %c0_i32_0 = arith.constant 0 : i32
    return %arg0, %c0_i32 : i32, i32
  }
  func.func @transform_3(%arg0: i32) -> (i32, i32) {
    %c0_i32 = arith.constant 0 : i32
    %c0_i32_0 = arith.constant 0 : i32
    %c0_i32_1 = arith.constant 0 : i32
    return %c0_i32, %c0_i32_0 : i32, i32
  }
  func.func @transform_4(%arg0: i32) -> (i32, i32) {
    %c0_i32 = arith.constant 0 : i32
    %c0_i32_0 = arith.constant 0 : i32
    %c0_i32_1 = arith.constant 0 : i32
    return %c0_i32, %c0_i32_0 : i32, i32
  }
  func.func @transform_5(%arg0: i32) -> (i32, i32) {
    %c0_i32 = arith.constant 0 : i32
    %c0_i32_0 = arith.constant 0 : i32
    %c0_i32_1 = arith.constant 0 : i32
    return %c0_i32, %c0_i32_0 : i32, i32
  }
  func.func @transform_6(%arg0: i32) -> (i32, i32) {
    %c0_i32 = arith.constant 0 : i32
    %c0_i32_0 = arith.constant 0 : i32
    return %arg0, %c0_i32 : i32, i32
  }
  func.func @transform_7(%arg0: i32) -> (i32, i32) {
    %c0_i32 = arith.constant 0 : i32
    %c0_i32_0 = arith.constant 0 : i32
    return %arg0, %c0_i32 : i32, i32
  }
  func.func @transform_8(%arg0: i32) -> (i32, i32) {
    %c0_i32 = arith.constant 0 : i32
    %c0_i32_0 = arith.constant 0 : i32
    return %arg0, %c0_i32 : i32, i32
  }
}

</mosaic_0001>

<llo_original>
// kernel: tpu_custom_call.1
$region0: #{tpu_custom_call.1}
  #allocation0 [shape = 'u32[]', space=smem, size = 0x4, offset = 0x4, fixed_abs, tag = 'smem constant byte address 0x4 - core index']
  #allocation1 [shape = 'u32[72,128]{1,0:T(1,128)}', space=vmem, size = 0x9000, scoped, tag = 'internal scratch']
  %s0 = inlined_call_operand.vmem [shape: f32[24,64], index: 0, kind: input, shape index: {}]
  %s1 = inlined_call_operand.vmem [shape: f32[24,32], index: 1, kind: input, shape index: {}]
  %s2 = inlined_call_operand.vmem [shape: s32[24,1], index: 2, kind: input, shape index: {}]
  %s3 = inlined_call_operand.vmem [shape: f32[128,64], index: 3, kind: input, shape index: {}]
  %s4 = inlined_call_operand.vmem [shape: bf16[128,64], index: 4, kind: input, shape index: {}]
  %s5 = inlined_call_operand.vmem [shape: f32[2,128], index: 5, kind: input, shape index: {}]
  %s6 = inlined_call_operand.hbm [shape: f32[24,128], index: 6, kind: output, shape index: {0}]
  %s7 = inlined_call_operand.hbm [shape: f32[24,128], index: 7, kind: output, shape index: {1}]
  %s8 = inlined_call_operand.vmem [shape: f32[24,1], index: 8, kind: output, shape index: {2}]
  %9 = xla_tuple %s6, %s7, %s8
  %s10 = sld [smem:[#allocation0]]
  $region73: #{tpu_custom_call.1} parent=0
    _
  %s12 = ssub.s32 1, %s10
  %s13 = scalar_select 0, %s12, %s10
  $region1: #{tpu_custom_call.1} parent=0
    #allocation2 [shape = 'u8[8192]{0}', space=vmem, size = 0x2000, scoped, tag = 'output window, operand 0']
    #allocation3 [shape = 's32[2]{0}', space=sflag, size = 0x8, scoped, tag = 'scoped memory for tpu_custom_call.1']
    #allocation4 [shape = 'u8[8192]{0}', space=vmem, size = 0x2000, scoped, tag = 'output window, operand 1']
    #allocation5 [shape = 's32[2]{0}', space=sflag, size = 0x8, scoped, tag = 'scoped memory for tpu_custom_call.1']
    %14 = vsyncpa [#allocation3], 0
    %s15 = scalar_lea.sflag [#allocation3], 1
    %16 = vsyncpa %s15, 0
    %17 = vsyncpa [#allocation5], 0
    %s18 = scalar_lea.sflag [#allocation5], 1
    %19 = vsyncpa %s18, 0
    loop: start=0, step=1, limit=5
    $region2: #{tpu_custom_call.1} parent=1 // loop_pre_header
      _
    $region3: #{tpu_custom_call.1} parent=1 // loop_header
      %s21 = sphi 0, %s25
      %p22 = scmp.ge.s32.totalorder %s21, 5
      %s31 = sphi 0, %s33
      %s34 = sphi 0, %s31
      %s35 = sphi 0, %s34
      %s51 = sphi 0, %s35
      %s57 = sphi 0, %s59
      %s60 = sphi 0, %s57
      %s61 = sphi 0, %s60
      %s77 = sphi 0, %s61
      %s83 = sphi 0, %s85
      %s86 = sphi 0, %s83
      %s87 = sphi 0, %s86
      %s103 = sphi 0, %s87
      %s107 = sphi 0, %s107
      %s109 = sphi 0, %s107
      %s110 = sphi 0, %s109
      %s124 = sphi 0, %s110
      %s128 = sphi 0, %s128
      %s130 = sphi 0, %s128
      %s131 = sphi 0, %s130
      %s145 = sphi 0, %s131
      %s149 = sphi 0, %s149
      %s151 = sphi 0, %s149
      %s152 = sphi 0, %s151
      %s166 = sphi 0, %s152
      %s172 = sphi 0, %s174
      %s175 = sphi 0, %s172
      %s176 = sphi 0, %s175
      %s192 = sphi 0, %s176
      %s198 = sphi 0, %s200
      %s201 = sphi 0, %s198
      %s202 = sphi 0, %s201
      %s218 = sphi 0, %s202
      %s224 = sphi 0, %s226
      %s227 = sphi 0, %s224
      %s228 = sphi 0, %s227
      %s244 = sphi 0, %s228
    $region4: #{tpu_custom_call.1} parent=1 // loop_header_branch
      %24 = sbr.rel (%p22) target = $region8
    $region5: #{tpu_custom_call.1} parent=1 // loop_body
      %s26 = ssub.s32 %s21, 1
      %s27 = ssub.s32 %s21, 2
      %s28 = sadd.s32 %s21, 1
      %s29 = ssub.s32 %s21, %s28
      %p30 = scmp.eq.s32.totalorder %s29, 0
      %s32 = sadd.s32 %s31, 1
      %s33 = scalar_select %p30, %s31, %s32
      %p36 = pneg %p30
      %p37 = scmp.eq.s32.totalorder %s21, 2
      %p38 = por %p36, %p37
      %p39 = scmp.ne.s32.totalorder %s31, %s34
      %p40 = scmp.eq.s32.totalorder %s21, 0
      %p41 = por %p39, %p40
      %p42 = scmp.ne.s32.totalorder %s31, %s34
      %p43 = scmp.eq.s32.totalorder %s26, 2
      %p44 = por %p42, %p43
      %p45 = scmp.ne.s32.totalorder %s34, %s35
      %p46 = scmp.eq.s32.totalorder %s26, 0
      %p47 = por %p45, %p46
      %p48 = scmp.ne.s32.totalorder %s34, %s35
      %p49 = scmp.eq.s32.totalorder %s27, 2
      %p50 = por %p48, %p49
      %p52 = scmp.ne.s32.totalorder %s35, %s51
      %p53 = scmp.eq.s32.totalorder %s27, 0
      %p54 = por %p52, %p53
      %s55 = ssub.s32 %s21, %s28
      %p56 = scmp.eq.s32.totalorder %s55, 0
      %s58 = sadd.s32 %s57, 1
      %s59 = scalar_select %p56, %s57, %s58
      %p62 = pneg %p56
      %p63 = scmp.eq.s32.totalorder %s21, 2
      %p64 = por %p62, %p63
      %p65 = scmp.ne.s32.totalorder %s57, %s60
      %p66 = scmp.eq.s32.totalorder %s21, 0
      %p67 = por %p65, %p66
      %p68 = scmp.ne.s32.totalorder %s57, %s60
      %p69 = scmp.eq.s32.totalorder %s26, 2
      %p70 = por %p68, %p69
      %p71 = scmp.ne.s32.totalorder %s60, %s61
      %p72 = scmp.eq.s32.totalorder %s26, 0
      %p73 = por %p71, %p72
      %p74 = scmp.ne.s32.totalorder %s60, %s61
      %p75 = scmp.eq.s32.totalorder %s27, 2
      %p76 = por %p74, %p75
      %p78 = scmp.ne.s32.totalorder %s61, %s77
      %p79 = scmp.eq.s32.totalorder %s27, 0
      %p80 = por %p78, %p79
      %s81 = ssub.s32 %s21, %s28
      %p82 = scmp.eq.s32.totalorder %s81, 0
      %s84 = sadd.s32 %s83, 1
      %s85 = scalar_select %p82, %s83, %s84
      %p88 = pneg %p82
      %p89 = scmp.eq.s32.totalorder %s21, 2
      %p90 = por %p88, %p89
      %p91 = scmp.ne.s32.totalorder %s83, %s86
      %p92 = scmp.eq.s32.totalorder %s21, 0
      %p93 = por %p91, %p92
      %p94 = scmp.ne.s32.totalorder %s83, %s86
      %p95 = scmp.eq.s32.totalorder %s26, 2
      %p96 = por %p94, %p95
      %p97 = scmp.ne.s32.totalorder %s86, %s87
      %p98 = scmp.eq.s32.totalorder %s26, 0
      %p99 = por %p97, %p98
      %p100 = scmp.ne.s32.totalorder %s86, %s87
      %p101 = scmp.eq.s32.totalorder %s27, 2
      %p102 = por %p100, %p101
      %p104 = scmp.ne.s32.totalorder %s87, %s103
      %p105 = scmp.eq.s32.totalorder %s27, 0
      %p106 = por %p104, %p105
      %s108 = sadd.s32 %s107, 1
      %p111 = scmp.eq.s32.totalorder %s21, 2
      %p112 = scmp.ne.s32.totalorder %s107, %s109
      %p113 = scmp.eq.s32.totalorder %s21, 0
      %p114 = por %p112, %p113
      %p115 = scmp.ne.s32.totalorder %s107, %s109
      %p116 = scmp.eq.s32.totalorder %s26, 2
      %p117 = por %p115, %p116
      %p118 = scmp.ne.s32.totalorder %s109, %s110
      %p119 = scmp.eq.s32.totalorder %s26, 0
      %p120 = por %p118, %p119
      %p121 = scmp.ne.s32.totalorder %s109, %s110
      %p122 = scmp.eq.s32.totalorder %s27, 2
      %p123 = por %p121, %p122
      %p125 = scmp.ne.s32.totalorder %s110, %s124
      %p126 = scmp.eq.s32.totalorder %s27, 0
      %p127 = por %p125, %p126
      %s129 = sadd.s32 %s128, 1
      %p132 = scmp.eq.s32.totalorder %s21, 2
      %p133 = scmp.ne.s32.totalorder %s128, %s130
      %p134 = scmp.eq.s32.totalorder %s21, 0
      %p135 = por %p133, %p134
      %p136 = scmp.ne.s32.totalorder %s128, %s130
      %p137 = scmp.eq.s32.totalorder %s26, 2
      %p138 = por %p136, %p137
      %p139 = scmp.ne.s32.totalorder %s130, %s131
      %p140 = scmp.eq.s32.totalorder %s26, 0
      %p141 = por %p139, %p140
      %p142 = scmp.ne.s32.totalorder %s130, %s131
      %p143 = scmp.eq.s32.totalorder %s27, 2
      %p144 = por %p142, %p143
      %p146 = scmp.ne.s32.totalorder %s131, %s145
      %p147 = scmp.eq.s32.totalorder %s27, 0
      %p148 = por %p146, %p147
      %s150 = sadd.s32 %s149, 1
      %p153 = scmp.eq.s32.totalorder %s21, 2
      %p154 = scmp.ne.s32.totalorder %s149, %s151
      %p155 = scmp.eq.s32.totalorder %s21, 0
      %p156 = por %p154, %p155
      %p157 = scmp.ne.s32.totalorder %s149, %s151
      %p158 = scmp.eq.s32.totalorder %s26, 2
      %p159 = por %p157, %p158
      %p160 = scmp.ne.s32.totalorder %s151, %s152
      %p161 = scmp.eq.s32.totalorder %s26, 0
      %p162 = por %p160, %p161
      %p163 = scmp.ne.s32.totalorder %s151, %s152
      %p164 = scmp.eq.s32.totalorder %s27, 2
      %p165 = por %p163, %p164
      %p167 = scmp.ne.s32.totalorder %s152, %s166
      %p168 = scmp.eq.s32.totalorder %s27, 0
      %p169 = por %p167, %p168
      %s170 = ssub.s32 %s21, %s28
      %p171 = scmp.eq.s32.totalorder %s170, 0
      %s173 = sadd.s32 %s172, 1
      %s174 = scalar_select %p171, %s172, %s173
      %p177 = pneg %p171
      %p178 = scmp.eq.s32.totalorder %s21, 2
      %p179 = por %p177, %p178
      %p180 = scmp.ne.s32.totalorder %s172, %s175
      %p181 = scmp.eq.s32.totalorder %s21, 0
      %p182 = por %p180, %p181
      %p183 = scmp.ne.s32.totalorder %s172, %s175
      %p184 = scmp.eq.s32.totalorder %s26, 2
      %p185 = por %p183, %p184
      %p186 = scmp.ne.s32.totalorder %s175, %s176
      %p187 = scmp.eq.s32.totalorder %s26, 0
      %p188 = por %p186, %p187
      %p189 = scmp.ne.s32.totalorder %s175, %s176
      %p190 = scmp.eq.s32.totalorder %s27, 2
      %p191 = por %p189, %p190
      %p193 = scmp.ne.s32.totalorder %s176, %s192
      %p194 = scmp.eq.s32.totalorder %s27, 0
      %p195 = por %p193, %p194
      %s196 = ssub.s32 %s21, %s28
      %p197 = scmp.eq.s32.totalorder %s196, 0
      %s199 = sadd.s32 %s198, 1
      %s200 = scalar_select %p197, %s198, %s199
      %p203 = pneg %p197
      %p204 = scmp.eq.s32.totalorder %s21, 2
      %p205 = por %p203, %p204
      %p206 = scmp.ne.s32.totalorder %s198, %s201
      %p207 = scmp.eq.s32.totalorder %s21, 0
      %p208 = por %p206, %p207
      %p209 = scmp.ne.s32.totalorder %s198, %s201
      %p210 = scmp.eq.s32.totalorder %s26, 2
      %p211 = por %p209, %p210
      %p212 = scmp.ne.s32.totalorder %s201, %s202
      %p213 = scmp.eq.s32.totalorder %s26, 0
      %p214 = por %p212, %p213
      %p215 = scmp.ne.s32.totalorder %s201, %s202
      %p216 = scmp.eq.s32.totalorder %s27, 2
      %p217 = por %p215, %p216
      %p219 = scmp.ne.s32.totalorder %s202, %s218
      %p220 = scmp.eq.s32.totalorder %s27, 0
      %p221 = por %p219, %p220
      %s222 = ssub.s32 %s21, %s28
      %p223 = scmp.eq.s32.totalorder %s222, 0
      %s225 = sadd.s32 %s224, 1
      %s226 = scalar_select %p223, %s224, %s225
      %p229 = pneg %p223
      %p230 = scmp.eq.s32.totalorder %s21, 2
      %p231 = por %p229, %p230
      %p232 = scmp.ne.s32.totalorder %s224, %s227
      %p233 = scmp.eq.s32.totalorder %s21, 0
      %p234 = por %p232, %p233
      %p235 = scmp.ne.s32.totalorder %s224, %s227
      %p236 = scmp.eq.s32.totalorder %s26, 2
      %p237 = por %p235, %p236
      %p238 = scmp.ne.s32.totalorder %s227, %s228
      %p239 = scmp.eq.s32.totalorder %s26, 0
      %p240 = por %p238, %p239
      %p241 = scmp.ne.s32.totalorder %s227, %s228
      %p242 = scmp.eq.s32.totalorder %s27, 2
      %p243 = por %p241, %p242
      %p245 = scmp.ne.s32.totalorder %s228, %s244
      %p246 = scmp.eq.s32.totalorder %s27, 0
      %p247 = por %p245, %p246
      %p248 = scmp.le.s32.totalorder 1, %s21
      %p249 = scmp.lt.s32.totalorder %s21, 4
      %p250 = pnand %p248, %p249
      %p251 = pneg %p250
      // Predicated region
      $region9: #{tpu_custom_call.1} parent=5 // pred_check
        _
      $region10: #{tpu_custom_call.1} parent=5 // pred_check_branch
        %253 = sbr.rel (%p250) target = $region12
      $region11: #{tpu_custom_call.1} parent=5 // pred_region
        %s254 = ssub.s32 %s21, 1
        // Predicated region
        $region13: #{tpu_custom_call.1} parent=11 // pred_check
          %p255 = pneg %p120
        $region14: #{tpu_custom_call.1} parent=11 // pred_check_branch
          %257 = sbr.rel (%p255) target = $region16
        $region15: #{tpu_custom_call.1} parent=11 // pred_region
          _
        $region16: #{tpu_custom_call.1} parent=11 // pred_fallthru
          _
        // Predicated region
        $region17: #{tpu_custom_call.1} parent=11 // pred_check
          %p258 = pneg %p141
        $region18: #{tpu_custom_call.1} parent=11 // pred_check_branch
          %260 = sbr.rel (%p258) target = $region20
        $region19: #{tpu_custom_call.1} parent=11 // pred_region
          _
        $region20: #{tpu_custom_call.1} parent=11 // pred_fallthru
          _
        // Predicated region
        $region21: #{tpu_custom_call.1} parent=11 // pred_check
          %p261 = pneg %p162
        $region22: #{tpu_custom_call.1} parent=11 // pred_check_branch
          %263 = sbr.rel (%p261) target = $region24
        $region23: #{tpu_custom_call.1} parent=11 // pred_region
          _
        $region24: #{tpu_custom_call.1} parent=11 // pred_fallthru
          _
      $region12: #{tpu_custom_call.1} parent=5 // pred_fallthru
        _
      %p264 = scmp.lt.s32.totalorder %s21, 3
      // Predicated region
      $region25: #{tpu_custom_call.1} parent=5 // pred_check
        %p265 = pneg %p264
      $region26: #{tpu_custom_call.1} parent=5 // pred_check_branch
        %267 = sbr.rel (%p265) target = $region28
      $region27: #{tpu_custom_call.1} parent=5 // pred_region
        // Predicated region
        $region29: #{tpu_custom_call.1} parent=27 // pred_check
          %p268 = pneg %p41
        $region30: #{tpu_custom_call.1} parent=27 // pred_check_branch
          %270 = sbr.rel (%p268) target = $region32
        $region31: #{tpu_custom_call.1} parent=27 // pred_region
          %p271 = scmp.lt.s32.totalorder %s21, 2
          %s272 = scalar_select %p271, %s21, 2
          %s273 = smul.addr %s272, 8
          %s274 = scalar_lea.vmem %s0, %s273
        $region32: #{tpu_custom_call.1} parent=27 // pred_fallthru
          _
        // Predicated region
        $region33: #{tpu_custom_call.1} parent=27 // pred_check
          %p275 = pneg %p67
        $region34: #{tpu_custom_call.1} parent=27 // pred_check_branch
          %277 = sbr.rel (%p275) target = $region36
        $region35: #{tpu_custom_call.1} parent=27 // pred_region
          %p278 = scmp.lt.s32.totalorder %s21, 2
          %s279 = scalar_select %p278, %s21, 2
          %s280 = smul.addr %s279, 8
          %s281 = scalar_lea.vmem %s1, %s280
        $region36: #{tpu_custom_call.1} parent=27 // pred_fallthru
          _
        // Predicated region
        $region37: #{tpu_custom_call.1} parent=27 // pred_check
          %p282 = pneg %p93
        $region38: #{tpu_custom_call.1} parent=27 // pred_check_branch
          %284 = sbr.rel (%p282) target = $region40
        $region39: #{tpu_custom_call.1} parent=27 // pred_region
          %p285 = scmp.lt.s32.totalorder %s21, 2
          %s286 = scalar_select %p285, %s21, 2
          %s287 = smul.addr %s286, 8
          %s288 = scalar_lea.vmem %s2, %s287
        $region40: #{tpu_custom_call.1} parent=27 // pred_fallthru
          _
      $region28: #{tpu_custom_call.1} parent=5 // pred_fallthru
        _
      %p289 = scmp.le.s32.totalorder 1, %s21
      %p290 = scmp.lt.s32.totalorder %s21, 4
      %p291 = pnand %p289, %p290
      %p292 = pneg %p291
      // Predicated region
      $region41: #{tpu_custom_call.1} parent=5 // pred_check
        _
      $region42: #{tpu_custom_call.1} parent=5 // pred_check_branch
        %294 = sbr.rel (%p291) target = $region44
      $region43: #{tpu_custom_call.1} parent=5 // pred_region
        %s295 = ssub.s32 %s21, 1
        %p296 = scmp.lt.s32.totalorder %s26, 2
        %s297 = scalar_select %p296, %s26, 2
        %s298 = smul.addr %s297, 8
        %s299 = scalar_lea.vmem %s0, %s298
        %p300 = pneg %p47
        %p301 = pneg %p44
        %p302 = scmp.lt.s32.totalorder %s26, 2
        %s303 = scalar_select %p302, %s26, 2
        %s304 = smul.addr %s303, 8
        %s305 = scalar_lea.vmem %s1, %s304
        %p306 = pneg %p73
        %p307 = pneg %p70
        %p308 = scmp.lt.s32.totalorder %s26, 2
        %s309 = scalar_select %p308, %s26, 2
        %s310 = smul.addr %s309, 8
        %s311 = scalar_lea.vmem %s2, %s310
        %p312 = pneg %p99
        %p313 = pneg %p96
        %p314 = pneg %p120
        %p315 = pneg %p117
        %p316 = pneg %p141
        %p317 = pneg %p138
        %p318 = pneg %p162
        %p319 = pneg %p159
        %p320 = pneg %p188
        %p321 = pneg %p185
        %s322 = sand.u32 %s175, 1
        %s323 = scalar_lea.sflag [#allocation3], %s322
        %s324 = sand.u32 %s175, 1
        %s325 = smul.addr %s324, 8
        %s326 = scalar_lea.vmem [#allocation2], %s325
        %p327 = pneg %p214
        %p328 = pneg %p211
        %s329 = sand.u32 %s201, 1
        %s330 = scalar_lea.sflag [#allocation5], %s329
        %s331 = sand.u32 %s201, 1
        %s332 = smul.addr %s331, 8
        %s333 = scalar_lea.vmem [#allocation4], %s332
        %p334 = pneg %p240
        %p335 = pneg %p237
        %p336 = scmp.lt.s32.totalorder %s26, 2
        %s337 = scalar_select %p336, %s26, 2
        %s338 = smul.addr %s337, 8
        %s339 = scalar_lea.vmem %s8, %s338
        %p340 = scmp.lt.s32.totalorder %s26, 2
        %s341 = scalar_select %p340, %s26, 2
        %s342 = smul.addr %s341, 8
        %s343 = scalar_lea.vmem %s0, %s342
        %p344 = scmp.lt.s32.totalorder %s26, 2
        %s345 = scalar_select %p344, %s26, 2
        %s346 = smul.addr %s345, 8
        %s347 = scalar_lea.vmem %s1, %s346
        %p348 = scmp.lt.s32.totalorder %s26, 2
        %s349 = scalar_select %p348, %s26, 2
        %s350 = smul.addr %s349, 8
        %s351 = scalar_lea.vmem %s2, %s350
        %p352 = scmp.lt.s32.totalorder %s26, 2
        %s353 = scalar_select %p352, %s26, 2
        %s354 = smul.addr %s353, 8
        %s355 = scalar_lea.vmem %s8, %s354
        %v356 = vld [vmem:[%s5] sm:$0x3]
        %v357 = vld [vmem:[%s343] sm:$0xff]
        %v358 = vld [vmem:[%s3] sm:$0xff]
        %v359 = vld [vmem:[%s3 + $0x8] sm:$0xff]
        %v360 = vld [vmem:[%s3 + $0x10] sm:$0xff]
        %v361 = vld [vmem:[%s3 + $0x18] sm:$0xff]
        %v362 = vld [vmem:[%s3 + $0x20] sm:$0xff]
        %v363 = vld [vmem:[%s3 + $0x28] sm:$0xff]
        %v364 = vld [vmem:[%s3 + $0x30] sm:$0xff]
        %v365 = vld [vmem:[%s3 + $0x38] sm:$0xff]
        %v366 = vld [vmem:[%s3 + $0x40] sm:$0xff]
        %v367 = vld [vmem:[%s3 + $0x48] sm:$0xff]
        %v368 = vld [vmem:[%s3 + $0x50] sm:$0xff]
        %v369 = vld [vmem:[%s3 + $0x58] sm:$0xff]
        %v370 = vld [vmem:[%s3 + $0x60] sm:$0xff]
        %v371 = vld [vmem:[%s3 + $0x68] sm:$0xff]
        %v372 = vld [vmem:[%s3 + $0x70] sm:$0xff]
        %v373 = vld [vmem:[%s3 + $0x78] sm:$0xff]
        %v374 = vperm.slane %v356, 0
        %vm375 = vcmask 523264
        %v377 = vsel %vm375, %v357, 0
        %v380 = vsel %vm375, %v358, 0
        %v383 = vsel %vm375, %v359, 0
        %v386 = vsel %vm375, %v360, 0
        %v389 = vsel %vm375, %v361, 0
        %v392 = vsel %vm375, %v362, 0
        %v395 = vsel %vm375, %v363, 0
        %v398 = vsel %vm375, %v364, 0
        %v401 = vsel %vm375, %v365, 0
        %v404 = vsel %vm375, %v366, 0
        %v407 = vsel %vm375, %v367, 0
        %v410 = vsel %vm375, %v368, 0
        %v413 = vsel %vm375, %v369, 0
        %v416 = vsel %vm375, %v370, 0
        %v419 = vsel %vm375, %v371, 0
        %v422 = vsel %vm375, %v372, 0
        %v425 = vsel %vm375, %v373, 0
        %427 = vmatpush.xpose.msra.mxu0 %v425
        %428 = vmatpush.xpose.msra.mxu0 %v422
        %429 = vmatpush.xpose.msra.mxu0 %v419
        %430 = vmatpush.xpose.msra.mxu0 %v416
        %431 = vmatpush.xpose.msra.mxu0 %v413
        %432 = vmatpush.xpose.msra.mxu0 %v410
        %433 = vmatpush.xpose.msra.mxu0 %v407
        %434 = vmatpush.xpose.msra.mxu0 %v404
        %435 = vmatpush.xpose.msra.mxu0 %v401
        %436 = vmatpush.xpose.msra.mxu0 %v398
        %437 = vmatpush.xpose.msra.mxu0 %v395
        %438 = vmatpush.xpose.msra.mxu0 %v392
        %439 = vmatpush.xpose.msra.mxu0 %v389
        %440 = vmatpush.xpose.msra.mxu0 %v386
        %441 = vmatpush.xpose.msra.mxu0 %v383
        %442 = vmatpush.xpose.msra.mxu0 %v380
        %443 = vmatmul.f32.gmra.mxu0 %v377
        %v444 = vpop.f32.mrf.mxu0
        %v445 = vadd.f32 %v374, %v444
        %446 = vdwg.mxu0
        %v447 = vld [vmem:[%s351] sm:$0xff]
        %v448 = vlaneseq
        %v449 = vand.u32 %v448, 127
        %v450 = vlaneseq
        %v451 = vshrl.u32 %v450, 7
        %s452 = smul.u32 %s26, 8
        %v453 = vstv %s452
        %v454 = vadd.s32 %v451, %v453
        %vm455 = vcmp.lt.s32.totalorder %v454, 20
        %456 = vset.pattern.permute.xlu0 0
        %457 = vperm.xlu0 %456, %v447
        %v458 = vpop.permute.xlu0 %457
        %vm459 = vcmp.eq.s32.totalorder %v458, %v449
        %v460 = vsel %vm455, 1, 0
        %vm461 = vcmp.eq.s32.totalorder %v460, 1
        %vm462 = vmand %vm459, %vm461
        %v463 = vsel %vm462, 1, 0
        %v464 = vcvt.s32.f32 %v463
        %465 = vst [vmem:[%s326] sm:$0xff] %v445
        %v466 = vperm.slane %v356, 1
        %v467 = vadd.f32 %v445, %v466
        %v468 = vmul.f32 %v464, %v467
        %v469 = vmul.f32 %v468, 0.1
        %v470 = vadd.f32 %v445, %v469
        %471 = vst [vmem:[%s333] sm:$0xff] %v470
        %v472 = vpack.c.bf16 %v464, %v464
        %v473 = vld [vmem:[%s4] sm:$0xf]
        %v474 = vld [vmem:[%s4 + $0x4] sm:$0xf]
        %v475 = vld [vmem:[%s4 + $0x8] sm:$0xf]
        %v476 = vld [vmem:[%s4 + $0xc] sm:$0xf]
        %v477 = vld [vmem:[%s4 + $0x10] sm:$0xf]
        %v478 = vld [vmem:[%s4 + $0x14] sm:$0xf]
        %v479 = vld [vmem:[%s4 + $0x18] sm:$0xf]
        %v480 = vld [vmem:[%s4 + $0x1c] sm:$0xf]
        %v481 = vld [vmem:[%s4 + $0x20] sm:$0xf]
        %v482 = vld [vmem:[%s4 + $0x24] sm:$0xf]
        %v483 = vld [vmem:[%s4 + $0x28] sm:$0xf]
        %v484 = vld [vmem:[%s4 + $0x2c] sm:$0xf]
        %v485 = vld [vmem:[%s4 + $0x30] sm:$0xf]
        %v486 = vld [vmem:[%s4 + $0x34] sm:$0xf]
        %v487 = vld [vmem:[%s4 + $0x38] sm:$0xf]
        %v488 = vld [vmem:[%s4 + $0x3c] sm:$0xf]
        %v505 = vunpack.c.l.b16 %v473
        %v506 = vunpack.c.l.b16 %v474
        %v507 = vunpack.c.l.b16 %v475
        %v508 = vunpack.c.l.b16 %v476
        %v509 = vunpack.c.l.b16 %v477
        %v510 = vunpack.c.l.b16 %v478
        %v511 = vunpack.c.l.b16 %v479
        %v512 = vunpack.c.l.b16 %v480
        %v513 = vunpack.c.l.b16 %v481
        %v514 = vunpack.c.l.b16 %v482
        %v515 = vunpack.c.l.b16 %v483
        %v516 = vunpack.c.l.b16 %v484
        %v517 = vunpack.c.l.b16 %v485
        %v518 = vunpack.c.l.b16 %v486
        %v519 = vunpack.c.l.b16 %v487
        %v520 = vunpack.c.l.b16 %v488
        %v521 = vpack.c.b16 %v506, %v505
        %v522 = vpack.c.b16 %v508, %v507
        %v523 = vpack.c.b16 %v510, %v509
        %v524 = vpack.c.b16 %v512, %v511
        %v525 = vpack.c.b16 %v514, %v513
        %v526 = vpack.c.b16 %v516, %v515
        %v527 = vpack.c.b16 %v518, %v517
        %v528 = vpack.c.b16 %v520, %v519
        %537 = vmatpush.bf16.msra.mxu0 %v528
        %538 = vmatpush.bf16.msra.mxu0 %v527
        %539 = vmatpush.bf16.msra.mxu0 %v526
        %540 = vmatpush.bf16.msra.mxu0 %v525
        %541 = vmatpush.bf16.msra.mxu0 %v524
        %542 = vmatpush.bf16.msra.mxu0 %v523
        %543 = vmatpush.bf16.msra.mxu0 %v522
        %544 = vmatpush.bf16.msra.mxu0 %v521
        %545 = vmatmul.bf16.gmra.mxu0 %v472
        %v546 = vpop.f32.mrf.mxu0
        %v547 = vadd.f32 0.0, %v546
        %v548 = vpop.f32.mrf.mxu0
        %549 = vdwg.mxu0
        %551 = vrot.lane.b32.xlu0 %v547, 96
        %v552 = vpop.permute.xlu0 %551
        %v554 = vadd.f32 %v547, %v552
        %v555 = vld [vmem:[%s347] sm:$0xff]
        %v556 = vsub.f32 %v555, %v554
        %v557 = vsel %vm461, %v556, 0.0
        %v558 = vmul.f32 %v557, %v557
        %vm559 = vcmask 261120
        %v560 = vsel %vm559, %v558, 0.0
        %561 = vadd.xlane.f32.xlu0 %v560
        %v562 = vpop.xlane.xlu0 %561
        %v563 = vmul.f32 %v562, 0.5
        %v564 = vmul.f32 %v464, %v466
        %565 = vadd.xlane.f32.xlu0 %v564
        %v566 = vpop.xlane.xlu0 %565
        %v567 = vadd.f32 %v563, %v566
        %vm568 = vcmask 7168
        %569 = vst.msk [vmem:[%s355] sm:$0xff] %vm568, %v567
        %s570 = sand.u32 %s175, 1
        %s571 = scalar_lea.sflag [#allocation3], %s570
        %s572 = sand.u32 %s175, 1
        %s573 = smul.addr %s572, 8
        %s574 = scalar_lea.vmem [#allocation2], %s573
        %s575 = sand.u32 %s201, 1
        %s576 = scalar_lea.sflag [#allocation5], %s575
        %s577 = sand.u32 %s201, 1
        %s578 = smul.addr %s577, 8
        %s579 = scalar_lea.vmem [#allocation4], %s578
        %p580 = scmp.lt.s32.totalorder %s26, 2
        %s581 = scalar_select %p580, %s26, 2
        %s582 = smul.addr %s581, 8
        %s583 = scalar_lea.vmem %s8, %s582
        // Predicated region
        $region45: #{tpu_custom_call.1} parent=43 // pred_check
          %p584 = pneg %p185
        $region46: #{tpu_custom_call.1} parent=43 // pred_check_branch
          %586 = sbr.rel (%p584) target = $region48
        $region47: #{tpu_custom_call.1} parent=43 // pred_region
          %588 = vsyncadd %s571, 0
          %s589 = smul.addr %s26, 8
          %s590 = scalar_lea.hbm %s6, %s589
          %s592 = sshll.u32 %s574, 4
          %s593 = int_to_ptr.vmem [resolvable:$true] %s592
          %s594 = sshll.u32 %s590, 4
          %s595 = int_to_ptr.hbm [resolvable:$true] %s594
          %597 = dma.vmem_to_hbm [thread:$0]  %s593, 128, %s595, %s571
        $region48: #{tpu_custom_call.1} parent=43 // pred_fallthru
          _
        // Predicated region
        $region49: #{tpu_custom_call.1} parent=43 // pred_check
          %p598 = pneg %p211
        $region50: #{tpu_custom_call.1} parent=43 // pred_check_branch
          %600 = sbr.rel (%p598) target = $region52
        $region51: #{tpu_custom_call.1} parent=43 // pred_region
          %602 = vsyncadd %s576, 0
          %s603 = smul.addr %s26, 8
          %s604 = scalar_lea.hbm %s7, %s603
          %s606 = sshll.u32 %s579, 4
          %s607 = int_to_ptr.vmem [resolvable:$true] %s606
          %s608 = sshll.u32 %s604, 4
          %s609 = int_to_ptr.hbm [resolvable:$true] %s608
          %611 = dma.vmem_to_hbm [thread:$0]  %s607, 128, %s609, %s576
        $region52: #{tpu_custom_call.1} parent=43 // pred_fallthru
          _
        // Predicated region
        $region53: #{tpu_custom_call.1} parent=43 // pred_check
          %p612 = pneg %p237
        $region54: #{tpu_custom_call.1} parent=43 // pred_check_branch
          %614 = sbr.rel (%p612) target = $region56
        $region55: #{tpu_custom_call.1} parent=43 // pred_region
          _
        $region56: #{tpu_custom_call.1} parent=43 // pred_fallthru
          _
      $region44: #{tpu_custom_call.1} parent=5 // pred_fallthru
        _
      %p615 = scmp.le.s32.totalorder 2, %s21
      // Predicated region
      $region57: #{tpu_custom_call.1} parent=5 // pred_check
        %p616 = pneg %p615
      $region58: #{tpu_custom_call.1} parent=5 // pred_check_branch
        %618 = sbr.rel (%p616) target = $region60
      $region59: #{tpu_custom_call.1} parent=5 // pred_region
        %s619 = ssub.s32 %s21, 2
        // Predicated region
        $region61: #{tpu_custom_call.1} parent=59 // pred_check
          %p620 = pneg %p191
        $region62: #{tpu_custom_call.1} parent=59 // pred_check_branch
          %622 = sbr.rel (%p620) target = $region64
        $region63: #{tpu_custom_call.1} parent=59 // pred_region
          %s623 = sand.u32 %s176, 1
          %s624 = scalar_lea.sflag [#allocation3], %s623
          %s625 = sand.u32 %s176, 1
          %s626 = smul.addr %s625, 8
          %s627 = scalar_lea.vmem [#allocation2], %s626
          %629 = dma.done %s624, 128
        $region64: #{tpu_custom_call.1} parent=59 // pred_fallthru
          _
        // Predicated region
        $region65: #{tpu_custom_call.1} parent=59 // pred_check
          %p630 = pneg %p217
        $region66: #{tpu_custom_call.1} parent=59 // pred_check_branch
          %632 = sbr.rel (%p630) target = $region68
        $region67: #{tpu_custom_call.1} parent=59 // pred_region
          %s633 = sand.u32 %s202, 1
          %s634 = scalar_lea.sflag [#allocation5], %s633
          %s635 = sand.u32 %s202, 1
          %s636 = smul.addr %s635, 8
          %s637 = scalar_lea.vmem [#allocation4], %s636
          %639 = dma.done %s634, 128
        $region68: #{tpu_custom_call.1} parent=59 // pred_fallthru
          _
        // Predicated region
        $region69: #{tpu_custom_call.1} parent=59 // pred_check
          %p640 = pneg %p243
        $region70: #{tpu_custom_call.1} parent=59 // pred_check_branch
          %642 = sbr.rel (%p640) target = $region72
        $region71: #{tpu_custom_call.1} parent=59 // pred_region
          %p643 = scmp.lt.s32.totalorder %s27, 2
          %s644 = scalar_select %p643, %s27, 2
          %s645 = smul.addr %s644, 8
          %s646 = scalar_lea.vmem %s8, %s645
        $region72: #{tpu_custom_call.1} parent=59 // pred_fallthru
          _
      $region60: #{tpu_custom_call.1} parent=5 // pred_fallthru
        _
    $region6: #{tpu_custom_call.1} parent=1 // loop_footer
      %s25 = sadd.s32 1, %s21
    $region7: #{tpu_custom_call.1} parent=1 // loop_footer_branch
      %20 = sbr.rel target = $region3
    $region8: #{tpu_custom_call.1} parent=1 // loop_exit
      _
    %647 = vsyncpa [#allocation3], 1
    %s648 = scalar_lea.sflag [#allocation3], 1
    %649 = vsyncpa %s648, 1
    %650 = vsyncpa [#allocation5], 1
    %s651 = scalar_lea.sflag [#allocation5], 1
    %652 = vsyncpa %s651, 1

</llo_original>
